<compile_context>
chip_gen: v5e
topology: v5e:2x2
jax: 0.10.0
libtpu: 0.0.40
codegen_flags: <defaults>
</compile_context>

<pallas_src>
import functools

import jax
import jax.numpy as jnp
from jax.experimental import pallas as pl
from jax.experimental.pallas import tpu as pltpu

ENC_CHANNELS = [(3, 16), (16, 32), (32, 64), (64, 128), (128, 256)]   # Conv2d k=3 s=2 p=1
DEC_CHANNELS = [(256, 128), (128, 64), (64, 32), (32, 16)]            # ConvT  k=4 s=2 p=1


# ------------------------------ small helpers -------------------------------

def _round_up(x, m):
    return ((x + m - 1) // m) * m


def _choose_tile(dim, unit, max_tile):
    """Largest multiple of `unit` that divides `dim` and is <= max_tile (dim % unit == 0)."""
    best = unit
    t = unit
    while t <= min(max_tile, dim):
        if dim % t == 0:
            best = t
        t += unit
    return best


def _vmem_limit(block_bytes):
    """Per-call VMEM limit derived from actual (double-buffered) block bytes."""
    return min(max(2 * block_bytes + (2 << 20), 16 << 20), 48 << 20)


# ----------------------------- Pallas GEMM kernel ----------------------------

def _epilogue(r, bias_ref, act, o_ref):
    if bias_ref is not None:
        r = r + bias_ref[...][:, :1]          # bias pre-broadcast to (tr, 128): lane-dense load
    if act == "sigmoid":
        r = jax.nn.sigmoid(r)                 # f32 EUP path
    o_ref[...] = r.astype(o_ref.dtype)


def _gemm_kernel(*refs, has_bias, act, nk, k_axis):
    a_ref, b_ref = refs[0], refs[1]
    idx = 2
    bias_ref = None
    if has_bias:
        bias_ref = refs[idx]
        idx += 1
    o_ref = refs[idx]
    idx += 1

    if nk == 1:
        # Single K block: no accumulator scratch, bias/activation fused into the only store.
        r = jnp.dot(a_ref[...], b_ref[...], preferred_element_type=jnp.float32)
        _epilogue(r, bias_ref, act, o_ref)
    else:
        acc_ref = refs[idx]
        k = pl.program_id(k_axis)

        @pl.when(k == 0)
        def _():
            acc_ref[...] = jnp.zeros_like(acc_ref)

        acc_ref[...] += jnp.dot(a_ref[...], b_ref[...], preferred_element_type=jnp.float32)

        @pl.when(k == nk - 1)
        def _():
            _epilogue(acc_ref[...], bias_ref, act, o_ref)


def gemm(lhs_pad, rhs, *, bias_pad=None, act=None, out_dtype=jnp.bfloat16):
    """out = lhs_pad @ rhs (+ bias) with optional sigmoid.

    lhs_pad: (Rp, Kp) bf16, pre-padded at init (Rp % 8 == 0, Kp % 128 == 0).
    rhs:     (K, M) bf16 activations (channels on sublanes, batch*spatial on lanes).
    Returns the PADDED (Rp, Mp) result; padded columns are exact zeros when bias is None.
    """
    Rp, Kp = lhs_pad.shape
    K, M = rhs.shape
    Mp = _round_up(M, 128)
    if K != Kp or M != Mp:
        rhs = jnp.pad(rhs, ((0, Kp - K), (0, Mp - M)))

    tr = _choose_tile(Rp, 8, 256)
    tm = _choose_tile(Mp, 128, 512)
    if Kp <= 2048:
        tk, nk = Kp, 1
    else:
        tk = _choose_tile(Kp, 128, 512)
        nk = Kp // tk

    if nk == 1:
        grid = (Rp // tr, Mp // tm)
        in_specs = [pl.BlockSpec((tr, Kp), lambda r, m: (r, 0)),
                    pl.BlockSpec((Kp, tm), lambda r, m: (0, m))]
        out_spec = pl.BlockSpec((tr, tm), lambda r, m: (r, m))
        bias_spec = pl.BlockSpec((tr, 128), lambda r, m: (r, 0))
        scratch = []
        sem = ("parallel", "parallel")
    else:
        grid = (Rp // tr, Mp // tm, nk)
        in_specs = [pl.BlockSpec((tr, tk), lambda r, m, k: (r, k)),
                    pl.BlockSpec((tk, tm), lambda r, m, k: (k, m))]
        out_spec = pl.BlockSpec((tr, tm), lambda r, m, k: (r, m))
        bias_spec = pl.BlockSpec((tr, 128), lambda r, m, k: (r, 0))
        scratch = [pltpu.VMEM((tr, tm), jnp.float32)]
        sem = ("parallel", "parallel", "arbitrary")

    args = [lhs_pad, rhs]
    if bias_pad is not None:
        in_specs.append(bias_spec)
        args.append(bias_pad)

    ob = jnp.dtype(out_dtype).itemsize
    blk = 2 * (tr * tk * 2 + tk * tm * 2 + tr * tm * ob)
    if bias_pad is not None:
        blk += 2 * tr * 128 * 4
    if nk > 1:
        blk += tr * tm * 4

    kern = functools.partial(_gemm_kernel, has_bias=bias_pad is not None,
                             act=act, nk=nk, k_axis=len(grid) - 1)
    return pl.pallas_call(
        kern,
        grid=grid,
        in_specs=in_specs,
        out_specs=out_spec,
        out_shape=jax.ShapeDtypeStruct((Rp, Mp), out_dtype),
        scratch_shapes=scratch,
        compiler_params=pltpu.CompilerParams(dimension_semantics=sem,
                                             vmem_limit_bytes=_vmem_limit(blk)),
    )(*args)


def gemm_phases(lhs_pad, rhs, *, out_dtype=jnp.bfloat16):
    """Fused 4-phase GEMM for the polyphase ConvTranspose2d.

    lhs_pad: (G, Rp, Kp) bf16 prepared phase weights.
    rhs:     (G, K, M)   bf16 phase columns.
    Returns a phase-major (Rp, G*Mp) slab: phase g occupies columns [g*Mp, (g+1)*Mp).
    """
    G, Rp, Kp = lhs_pad.shape
    G2, K, M = rhs.shape
    assert G == G2 and Kp <= 2048
    Mp = _round_up(M, 128)
    if K != Kp or M != Mp:
        rhs = jnp.pad(rhs, ((0, 0), (0, Kp - K), (0, Mp - M)))

    tr = _choose_tile(Rp, 8, 256)
    tm = _choose_tile(Mp, 128, 512)
    nm = Mp // tm
    grid = (G, Rp // tr, nm)

    in_specs = [pl.BlockSpec((None, tr, Kp), lambda g, r, m: (g, r, 0)),
                pl.BlockSpec((None, Kp, tm), lambda g, r, m: (g, 0, m))]
    out_spec = pl.BlockSpec((tr, tm), lambda g, r, m: (r, g * nm + m))

    ob = jnp.dtype(out_dtype).itemsize
    blk = 2 * (tr * Kp * 2 + Kp * tm * 2 + tr * tm * ob)
    kern = functools.partial(_gemm_kernel, has_bias=False, act=None, nk=1, k_axis=2)
    return pl.pallas_call(
        kern,
        grid=grid,
        in_specs=in_specs,
        out_specs=out_spec,
        out_shape=jax.ShapeDtypeStruct((Rp, G * Mp), out_dtype),
        compiler_params=pltpu.CompilerParams(
            dimension_semantics=("parallel", "parallel", "parallel"),
            vmem_limit_bytes=_vmem_limit(blk)),
    )(lhs_pad, rhs)


# --------------------------- Pallas BatchNorm+ReLU ---------------------------

def _bn_relu_kernel(x_ref, g_ref, b_ref, o_ref, *, inv_count):
    x = x_ref[...].astype(jnp.float32)                      # (tc, Mt)
    s = jnp.sum(x, axis=1, keepdims=True)
    ss = jnp.sum(x * x, axis=1, keepdims=True)
    mean = s * inv_count                                    # true count: zero-padded columns
    var = jnp.maximum(ss * inv_count - mean * mean, 0.0)    # contribute nothing to sum/sumsq
    inv = jax.lax.rsqrt(var + 1e-5)                         # biased variance (training mode)
    y = (x - mean) * inv * g_ref[...][:, :1] + b_ref[...][:, :1]
    o_ref[...] = jnp.maximum(y, 0.0).astype(o_ref.dtype)


def bn_relu(x_pad, gamma_pad, beta_pad, count):
    """Training-mode BatchNorm2d + ReLU on a channels-first (Cp, Mt) bf16 slab.

    `count` is the TRUE number of valid columns per channel; padded columns must be exact
    zeros (guaranteed by the bias-free GEMMs that feed this kernel).
    """
    Cp, Mt = x_pad.shape
    tc = 8
    t = 8
    budget = 12 << 20                                       # keep blocks small for v7x VMEM
    while t <= min(Cp, 256):
        if Cp % t == 0 and 8 * t * Mt <= budget:            # bf16 in+out, double-buffered
            tc = t
        t += 8
    blk = 2 * (tc * Mt * 2 + tc * Mt * 2 + 2 * tc * 128 * 4)
    kern = functools.partial(_bn_relu_kernel, inv_count=1.0 / float(count))
    return pl.pallas_call(
        kern,
        grid=(Cp // tc,),
        in_specs=[pl.BlockSpec((tc, Mt), lambda c: (c, 0)),
                  pl.BlockSpec((tc, 128), lambda c: (c, 0)),
                  pl.BlockSpec((tc, 128), lambda c: (c, 0))],
        out_specs=pl.BlockSpec((tc, Mt), lambda c: (c, 0)),
        out_shape=jax.ShapeDtypeStruct((Cp, Mt), jnp.bfloat16),
        compiler_params=pltpu.CompilerParams(dimension_semantics=("parallel",),
                                             vmem_limit_bytes=_vmem_limit(blk)),
    )(x_pad, gamma_pad, beta_pad)


# ------------------------------ conv lowerings -------------------------------

def _im2col(x, k, stride, pad):
    """x: (Cin, N, H, W) bf16 -> col (Cin*k*k, N*Ho*Wo) bf16 (built directly in bf16)."""
    Cin, N, H, W = x.shape
    Ho = (H + 2 * pad - k) // stride + 1
    Wo = (W + 2 * pad - k) // stride + 1
    xp = jnp.pad(x, ((0, 0), (0, 0), (pad, pad), (pad, pad)))
    taps = [xp[:, :, ki:ki + stride * Ho:stride, kj:kj + stride * Wo:stride]
            for ki in range(k) for kj in range(k)]
    col = jnp.stack(taps, axis=1).reshape(Cin * k * k, N * Ho * Wo)
    return col, Ho, Wo


def conv2d(h, w_pad, cout, k, stride, pad, bias_pad=None, act=None, gamma=None, beta=None):
    """PyTorch Conv2d on a channels-first (Cin, N, H, W) bf16 tensor via im2col + MXU GEMM.
    If gamma/beta are given, train-mode BN+ReLU is applied on the padded GEMM output
    (bf16); otherwise the output is f32 with optional fused bias/activation."""
    _, N, _, _ = h.shape
    col, Ho, Wo = _im2col(h, k, stride, pad)
    M = N * Ho * Wo
    if gamma is not None:
        out = gemm(w_pad, col, out_dtype=jnp.bfloat16)       # bias dropped: cancelled by BN
        out = bn_relu(out, gamma, beta, M)
    else:
        out = gemm(w_pad, col, bias_pad=bias_pad, act=act, out_dtype=jnp.float32)
    return out[:cout, :M].reshape(cout, N, Ho, Wo)


def _polyphase_cols(x):
    """x: (Cin, N, H, W) bf16 -> (4, Cin*4, N*H*W) columns for ConvT(k=4, s=2, p=1)."""
    Cin, N, H, W = x.shape
    xp = jnp.pad(x, ((0, 0), (0, 0), (1, 1), (1, 1)))
    cols = []
    for py in (0, 1):
        for px in (0, 1):
            taps = [xp[:, :, py - ty + 1:py - ty + 1 + H, px - tx + 1:px - tx + 1 + W]
                    for ty in (0, 1) for tx in (0, 1)]
            cols.append(jnp.stack(taps, axis=1).reshape(Cin * 4, N * H * W))
    return jnp.stack(cols, axis=0)


def conv_transpose2d_s2(d, w4_pad, cout, gamma=None, beta=None):
    """PyTorch ConvTranspose2d(k=4, stride=2, padding=1) via polyphase decomposition.

    d: (Cin, N, H, W) bf16; w4_pad: (4, Rp, Kp) prepared phase weights.  All 4 phase GEMMs
    run in ONE pallas_call.  If gamma/beta are given, BN+ReLU is fused on the phase-major
    (Cout, 4*M) layout before the spatial interleave (statistics are identical)."""
    _, N, H, W = d.shape
    M = N * H * W
    Mp = _round_up(M, 128)
    cols = _polyphase_cols(d)
    out_dtype = jnp.bfloat16 if gamma is not None else jnp.float32
    out = gemm_phases(w4_pad, cols, out_dtype=out_dtype)               # (Rp, 4*Mp)
    if gamma is not None:
        out = bn_relu(out, gamma, beta, 4 * M)
    Rp = out.shape[0]
    out = out.reshape(Rp, 4, Mp)[:cout, :, :M]
    out = out.reshape(cout, 2, 2, N, H, W).transpose(0, 3, 4, 1, 5, 2)
    return out.reshape(cout, N, 2 * H, 2 * W)


# ------------------------------ Parameters -----------------------------------

def init_params(key, latent_dim):
    keys = iter(jax.random.split(key, 64))

    def conv_p(cout, cin, k):
        return {"w": 0.05 * jax.random.normal(next(keys), (cout, cin, k, k), jnp.float32),
                "b": 0.01 * jax.random.normal(next(keys), (cout,), jnp.float32)}

    def convT_p(cin, cout, k):
        return {"w": 0.05 * jax.random.normal(next(keys), (cin, cout, k, k), jnp.float32),
                "b": 0.01 * jax.random.normal(next(keys), (cout,), jnp.float32)}

    def bn_p(c):
        return {"gamma": jnp.ones((c,), jnp.float32), "beta": jnp.zeros((c,), jnp.float32)}

    def lin_p(out_d, in_d):
        return {"w": 0.05 * jax.random.normal(next(keys), (out_d, in_d), jnp.float32),
                "b": 0.01 * jax.random.normal(next(keys), (out_d,), jnp.float32)}

    return {
        "enc_conv": [conv_p(co, ci, 3) for ci, co in ENC_CHANNELS],
        "enc_bn": [bn_p(co) for _, co in ENC_CHANNELS],
        "fc_mu": lin_p(latent_dim, 256),
        "fc_logvar": lin_p(latent_dim, 256),
        "dec_fc": lin_p(256 * 2 * 2, latent_dim),
        "dec_convT": [convT_p(ci, co, 4) for ci, co in DEC_CHANNELS] + [convT_p(16, 3, 3)],
        "dec_bn": [bn_p(co) for _, co in DEC_CHANNELS],
    }


def _pad2d(a, rows, cols):
    r, c = a.shape
    return jnp.pad(a, ((0, rows - r), (0, cols - c)))


def _lane_bcast(v, rows):
    """Pad a per-channel vector to `rows` and broadcast to a lane-dense (rows, 128) f32."""
    v = jnp.pad(v.astype(jnp.float32), (0, rows - v.shape[0]))
    return jnp.tile(v.reshape(rows, 1), (1, 128))


def _prep_conv_w(w):
    """(Cout, Cin, k, k) -> padded (Rp, Kp) bf16, K order (cin, ki, kj) to match _im2col."""
    cout, cin, kh, kw = w.shape
    a = w.reshape(cout, cin * kh * kw)
    return _pad2d(a, _round_up(cout, 8), _round_up(cin * kh * kw, 128)).astype(jnp.bfloat16)


def _prep_phase_w(w):
    """Torch ConvT weight (Cin, Cout, 4, 4) -> padded (4, Rp, Kp) bf16 phase weights."""
    cin, cout = w.shape[0], w.shape[1]
    w_t = w.transpose(1, 0, 2, 3)                                    # (Cout, Cin, ky, kx)
    rp, kp = _round_up(cout, 8), _round_up(cin * 4, 128)
    phases = []
    for py in (0, 1):
        for px in (0, 1):
            wsub = w_t[:, :, (1 - py)::2, (1 - px)::2].reshape(cout, cin * 4)
            phases.append(_pad2d(wsub, rp, kp))
    return jnp.stack(phases, axis=0).astype(jnp.bfloat16)


def prepare_params(params, latent_dim):
    """One-time conversion of raw params into padded bf16 GEMM layouts (done outside the
    forward so no pad/convert of constants happens per step)."""
    prep = {"enc": [], "dec": []}
    for cp, bp in zip(params["enc_conv"], params["enc_bn"]):
        cout = cp["w"].shape[0]
        rp = _round_up(cout, 8)
        # conv bias dropped: exactly cancelled by the following train-mode BatchNorm.
        prep["enc"].append({"w": _prep_conv_w(cp["w"]),
                            "gamma": _lane_bcast(bp["gamma"], rp),
                            "beta": _lane_bcast(bp["beta"], rp)})

    wmv = jnp.concatenate([params["fc_mu"]["w"], params["fc_logvar"]["w"]], axis=0)
    bmv = jnp.concatenate([params["fc_mu"]["b"], params["fc_logvar"]["b"]], axis=0)
    rp = _round_up(2 * latent_dim, 8)
    prep["fc_muvar"] = {"w": _pad2d(wmv, rp, _round_up(wmv.shape[1], 128)).astype(jnp.bfloat16),
                        "b": _lane_bcast(bmv, rp)}

    wd, bd = params["dec_fc"]["w"], params["dec_fc"]["b"]
    rp = _round_up(wd.shape[0], 8)
    prep["dec_fc"] = {"w": _pad2d(wd, rp, _round_up(wd.shape[1], 128)).astype(jnp.bfloat16),
                      "b": _lane_bcast(bd, rp)}

    for ct, bp in zip(params["dec_convT"][:4], params["dec_bn"]):
        cout = ct["w"].shape[1]
        rp = _round_up(cout, 8)
        # ConvT bias dropped: exactly cancelled by the following train-mode BatchNorm.
        prep["dec"].append({"w4": _prep_phase_w(ct["w"]),
                            "gamma": _lane_bcast(bp["gamma"], rp),
                            "beta": _lane_bcast(bp["beta"], rp)})

    ct = params["dec_convT"][4]          # ConvT(16, 3, k=3, s=1, p=1) == conv w/ flipped kernel
    w_eff = jnp.flip(ct["w"], axis=(2, 3)).transpose(1, 0, 2, 3)     # (3, 16, 3, 3)
    prep["out_conv"] = {"w": _prep_conv_w(w_eff),
                        "b": _lane_bcast(ct["b"], _round_up(3, 8))}
    return prep


# ------------------------------ VAE forward ----------------------------------

def vae_forward(prep, x_nchw, eps, latent_dim):
    N = x_nchw.shape[0]
    # One boundary transpose + bf16 cast; everything stays channels-first afterwards.
    h = x_nchw.transpose(1, 0, 2, 3).astype(jnp.bfloat16)            # (3, N, 32, 32)

    # ---- encode ----
    for (_, cout), layer in zip(ENC_CHANNELS, prep["enc"]):
        h = conv2d(h, layer["w"], cout, 3, 2, 1, gamma=layer["gamma"], beta=layer["beta"])

    h2 = h.reshape(256, N)                                            # spatial is 1x1
    mv = gemm(prep["fc_muvar"]["w"], h2, bias_pad=prep["fc_muvar"]["b"],
              out_dtype=jnp.float32)                                  # fused mu||logvar heads
    mu_cf = mv[:latent_dim, :N]
    logvar_cf = mv[latent_dim:2 * latent_dim, :N]

    # ---- reparameterize (tiny elementwise op; plain JAX, XLA fuses it) ----
    z_cf = mu_cf + eps.T * jnp.exp(0.5 * logvar_cf)                   # (latent, N)

    # ---- decode ----
    d = gemm(prep["dec_fc"]["w"], z_cf.astype(jnp.bfloat16),
             bias_pad=prep["dec_fc"]["b"], out_dtype=jnp.bfloat16)    # (1024, Mp) bf16
    d = d[:, :N].reshape(256, 2, 2, N).transpose(0, 3, 1, 2)          # (256, N, 2, 2)

    for (_, cout), layer in zip(DEC_CHANNELS, prep["dec"]):
        d = conv_transpose2d_s2(d, layer["w4"], cout,
                                gamma=layer["gamma"], beta=layer["beta"])

    xr = conv2d(d, prep["out_conv"]["w"], 3, 3, 1, 1,
                bias_pad=prep["out_conv"]["b"], act="sigmoid")        # (3, N, 32, 32) f32
    x_recon = xr.transpose(1, 0, 2, 3)
    return x_recon, mu_cf.T, logvar_cf.T


# ------------------------------ main ------------------------------------------

if __name__ == "__main__":
    key = jax.random.PRNGKey(0)
    kp, kx, keps, k1, k2, k3 = jax.random.split(key, 6)

    # ---- unit check 1: stride-2 conv building block vs lax (im2col / weight layout) ----
    cin_t, cout_t, n_t, hw_t = 8, 16, 2, 8
    xt = jax.random.normal(k1, (n_t, cin_t, hw_t, hw_t), jnp.float32)
    wc = 0.2 * jax.random.normal(k2, (cout_t, cin_t, 3, 3), jnp.float32)
    got = conv2d(xt.transpose(1, 0, 2, 3).astype(jnp.bfloat16), _prep_conv_w(wc),
                 cout_t, 3, 2, 1).transpose(1, 0, 2, 3)
    want = jax.lax.conv_general_dilated(xt, wc, (2, 2), ((1, 1), (1, 1)),
                                        dimension_numbers=("NCHW", "OIHW", "NCHW"))
    assert bool(jnp.allclose(got, want, atol=5e-2, rtol=5e-2)), "conv2d mismatch vs lax"

    # ---- unit check 2: polyphase ConvTranspose2d(k=4,s=2,p=1) vs lax ----
    wt = 0.2 * jax.random.normal(k3, (cin_t, cout_t, 4, 4), jnp.float32)
    got = conv_transpose2d_s2(xt.transpose(1, 0, 2, 3).astype(jnp.bfloat16),
                              _prep_phase_w(wt), cout_t).transpose(1, 0, 2, 3)
    want = jax.lax.conv_general_dilated(xt, jnp.flip(wt, (2, 3)).transpose(1, 0, 2, 3),
                                        (1, 1), ((2, 2), (2, 2)), lhs_dilation=(2, 2),
                                        dimension_numbers=("NCHW", "OIHW", "NCHW"))
    assert bool(jnp.allclose(got, want, atol=5e-2, rtol=5e-2)), "conv_transpose2d mismatch vs lax"

    # ---- full VAE forward ----
    latent_dim = 16
    batch = 2
    # Input must be 32x32 so the encoder bottoms out at (256, N, 1, 1) -> Linear(256, ...)
    x = jax.random.uniform(kx, (batch, 3, 32, 32), jnp.float32)
    eps = jax.random.normal(keps, (batch, latent_dim), jnp.float32)

    params = init_params(kp, latent_dim)
    prep = prepare_params(params, latent_dim)

    fwd = jax.jit(vae_forward, static_argnames=("latent_dim",))
    x_recon, mu, logvar = fwd(prep, x, eps, latent_dim=latent_dim)
    jax.block_until_ready((x_recon, mu, logvar))

    assert x_recon.shape == (batch, 3, 32, 32)
    assert mu.shape == (batch, latent_dim)
    assert logvar.shape == (batch, latent_dim)
    assert bool(jnp.all(jnp.isfinite(x_recon)))
    assert bool(jnp.all(jnp.isfinite(mu))) and bool(jnp.all(jnp.isfinite(logvar)))
    assert bool(jnp.all((x_recon >= 0.0) & (x_recon <= 1.0)))
    print("KERNEL_OK")
</pallas_src>

<mosaic_0001>
module attributes {stable_mosaic.version = 11 : i64} {
  func.func @_gemm_kernel(%arg0: i32, %arg1: i32, %arg2: memref<16x128xbf16, #tpu.memory_space<vmem>>, %arg3: memref<128x128xbf16, #tpu.memory_space<vmem>>, %arg4: memref<16x128xf32, #tpu.memory_space<vmem>>) attributes {dimension_semantics = [#tpu.dimension_semantics<parallel>, #tpu.dimension_semantics<parallel>], iteration_bounds = array<i64: 1, 1>, scalar_prefetch = 0 : i64, scratch_operands = 0 : i64, tpu.core_type = #tpu.core_type<tc>, window_params = [{transform_indices = @transform_0, window_bounds = array<i64: 16, 128>}, {transform_indices = @transform_1, window_bounds = array<i64: 128, 128>}, {transform_indices = @transform_2, window_bounds = array<i64: 16, 128>}]} {
    %c0 = arith.constant 0 : index
    %c0_0 = arith.constant 0 : index
    %0 = vector.load %arg2[%c0, %c0_0] : memref<16x128xbf16, #tpu.memory_space<vmem>>, vector<16x128xbf16>
    %c0_1 = arith.constant 0 : index
    %c0_2 = arith.constant 0 : index
    %1 = vector.load %arg3[%c0_1, %c0_2] : memref<128x128xbf16, #tpu.memory_space<vmem>>, vector<128x128xbf16>
    %cst = arith.constant dense<0.000000e+00> : vector<16x128xf32>
    %2 = tpu.matmul %0, %1, %cst {dimension_numbers = #tpu.dot_dimension_numbers<[1], [0], [0], [1], [0, 0, 1, 1], [], []>} : vector<16x128xbf16>, vector<128x128xbf16>, vector<16x128xf32> -> vector<16x128xf32>
    %c0_3 = arith.constant 0 : index
    %c0_4 = arith.constant 0 : index
    %3 = vector.load %arg4[%c0_3, %c0_4] : memref<16x128xf32, #tpu.memory_space<vmem>>, vector<16x128xf32>
    tpu.vector_store %arg4[%c0_3, %c0_4], %2 {strides = array<i32>} : memref<16x128xf32, #tpu.memory_space<vmem>>, vector<16x128xf32>,
    return
  }
  func.func @transform_0(%arg0: i32, %arg1: i32) -> (i32, i32) {
    %c0_i32 = arith.constant 0 : i32
    %c0_i32_0 = arith.constant 0 : i32
    return %arg0, %c0_i32 : i32, i32
  }
  func.func @transform_1(%arg0: i32, %arg1: i32) -> (i32, i32) {
    %c0_i32 = arith.constant 0 : i32
    %c0_i32_0 = arith.constant 0 : i32
    return %c0_i32, %arg1 : i32, i32
  }
  func.func @transform_2(%arg0: i32, %arg1: i32) -> (i32, i32) {
    %c0_i32 = arith.constant 0 : i32
    return %arg0, %arg1 : i32, i32
  }
}

</mosaic_0001>

<llo_original>
// kernel: tpu_custom_call.1
$region0: #{tpu_custom_call.1}
  #allocation0 [shape = 'u32[]', space=smem, size = 0x4, offset = 0x4, fixed_abs, tag = 'smem constant byte address 0x4 - core index']
  #allocation1 [shape = 'u32[72,128]{1,0:T(1,128)}', space=vmem, size = 0x9000, scoped, tag = 'internal scratch']
  %s0 = inlined_call_operand.hbm [shape: bf16[16,128], index: 0, kind: input, shape index: {}]
  %s1 = inlined_call_operand.hbm [shape: bf16[128,128], index: 1, kind: input, shape index: {}]
  %s2 = inlined_call_operand.hbm [shape: f32[16,128], index: 2, kind: output, shape index: {}]
  %s3 = sld [smem:[#allocation0]]
  $region26: #{tpu_custom_call.1} parent=0
    _
  %s5 = ssub.s32 1, %s3
  %s6 = scalar_select 0, %s5, %s3
  $region1: #{tpu_custom_call.1} parent=0
    #allocation2 [shape = 'u8[4096]{0}', space=vmem, size = 0x1000, scoped, tag = 'input window, operand 0, single buffered']
    #allocation3 [shape = 's32[1]{0}', space=sflag, size = 0x4, scoped, tag = 'scoped memory for tpu_custom_call.1']
    #allocation4 [shape = 's32[1]{0}', space=sflag, size = 0x4, scoped, tag = 'scoped memory for tpu_custom_call.1']
    #allocation5 [shape = 'u8[32768]{0}', space=vmem, size = 0x8000, scoped, tag = 'input window, operand 1, single buffered']
    #allocation6 [shape = 's32[1]{0}', space=sflag, size = 0x4, scoped, tag = 'scoped memory for tpu_custom_call.1']
    #allocation7 [shape = 'u8[8192]{0}', space=vmem, size = 0x2000, scoped, tag = 'output window, operand 0, single buffered']
    %7 = vsyncpa [#allocation3], 0
    %8 = vsyncpa [#allocation6], 0
    %9 = vsyncpa [#allocation4], 0
    // Predicated region
    $region2: #{tpu_custom_call.1} parent=1 // pred_check
      _
    $region3: #{tpu_custom_call.1} parent=1 // pred_check_branch
      %11 = sbr.rel (0) target = $region5
    $region4: #{tpu_custom_call.1} parent=1 // pred_region
      %13 = vsyncadd [#allocation3], 0
      %s14 = sshll.u32 %s0, 4
      %s15 = int_to_ptr.hbm [resolvable:$true] %s14
      %s16 = sshll.u32 [#allocation2], 4
      %s17 = int_to_ptr.vmem [resolvable:$true] %s16
      %22 = dma.hbm_to_vmem [thread:$0]  %s15, 128, %s17, [#allocation3], 64, 64, 4
    $region5: #{tpu_custom_call.1} parent=1 // pred_fallthru
      _
    // Predicated region
    $region6: #{tpu_custom_call.1} parent=1 // pred_check
      _
    $region7: #{tpu_custom_call.1} parent=1 // pred_check_branch
      %24 = sbr.rel (0) target = $region9
    $region8: #{tpu_custom_call.1} parent=1 // pred_region
      %26 = vsyncadd [#allocation6], 0
      %s27 = sshll.u32 %s1, 4
      %s28 = int_to_ptr.hbm [resolvable:$true] %s27
      %s29 = sshll.u32 [#allocation5], 4
      %s30 = int_to_ptr.vmem [resolvable:$true] %s29
      %35 = dma.hbm_to_vmem [thread:$0]  %s28, 1024, %s30, [#allocation6], 64, 64, 4
    $region9: #{tpu_custom_call.1} parent=1 // pred_fallthru
      _
    // Predicated region
    $region10: #{tpu_custom_call.1} parent=1 // pred_check
      _
    $region11: #{tpu_custom_call.1} parent=1 // pred_check_branch
      %37 = sbr.rel (0) target = $region13
    $region12: #{tpu_custom_call.1} parent=1 // pred_region
      %39 = dma.done [#allocation3], 128
    $region13: #{tpu_custom_call.1} parent=1 // pred_fallthru
      _
    // Predicated region
    $region14: #{tpu_custom_call.1} parent=1 // pred_check
      _
    $region15: #{tpu_custom_call.1} parent=1 // pred_check_branch
      %41 = sbr.rel (0) target = $region17
    $region16: #{tpu_custom_call.1} parent=1 // pred_region
      %43 = dma.done [#allocation6], 1024
    $region17: #{tpu_custom_call.1} parent=1 // pred_fallthru
      _
    %v44 = vld [vmem:[#allocation2] sm:$0xf]
    %v45 = vld [vmem:[#allocation2 + $0x4] sm:$0xf]
    %v46 = vld [vmem:[#allocation5] sm:$0xf]
    %v47 = vld [vmem:[#allocation5 + $0x4] sm:$0xf]
    %v48 = vld [vmem:[#allocation5 + $0x8] sm:$0xf]
    %v49 = vld [vmem:[#allocation5 + $0xc] sm:$0xf]
    %v50 = vld [vmem:[#allocation5 + $0x10] sm:$0xf]
    %v51 = vld [vmem:[#allocation5 + $0x14] sm:$0xf]
    %v52 = vld [vmem:[#allocation5 + $0x18] sm:$0xf]
    %v53 = vld [vmem:[#allocation5 + $0x1c] sm:$0xf]
    %v54 = vld [vmem:[#allocation5 + $0x20] sm:$0xf]
    %v55 = vld [vmem:[#allocation5 + $0x24] sm:$0xf]
    %v56 = vld [vmem:[#allocation5 + $0x28] sm:$0xf]
    %v57 = vld [vmem:[#allocation5 + $0x2c] sm:$0xf]
    %v58 = vld [vmem:[#allocation5 + $0x30] sm:$0xf]
    %v59 = vld [vmem:[#allocation5 + $0x34] sm:$0xf]
    %v60 = vld [vmem:[#allocation5 + $0x38] sm:$0xf]
    %v61 = vld [vmem:[#allocation5 + $0x3c] sm:$0xf]
    %v64 = vunpack.c.l.b16 %v44
    %v65 = vunpack.c.l.b16 %v45
    %v66 = vpack.c.b16 %v65, %v64
    %v84 = vunpack.c.l.b16 %v46
    %v85 = vunpack.c.l.b16 %v47
    %v86 = vunpack.c.l.b16 %v48
    %v87 = vunpack.c.l.b16 %v49
    %v88 = vunpack.c.l.b16 %v50
    %v89 = vunpack.c.l.b16 %v51
    %v90 = vunpack.c.l.b16 %v52
    %v91 = vunpack.c.l.b16 %v53
    %v92 = vunpack.c.l.b16 %v54
    %v93 = vunpack.c.l.b16 %v55
    %v94 = vunpack.c.l.b16 %v56
    %v95 = vunpack.c.l.b16 %v57
    %v96 = vunpack.c.l.b16 %v58
    %v97 = vunpack.c.l.b16 %v59
    %v98 = vunpack.c.l.b16 %v60
    %v99 = vunpack.c.l.b16 %v61
    %v100 = vpack.c.b16 %v85, %v84
    %v101 = vpack.c.b16 %v87, %v86
    %v102 = vpack.c.b16 %v89, %v88
    %v103 = vpack.c.b16 %v91, %v90
    %v104 = vpack.c.b16 %v93, %v92
    %v105 = vpack.c.b16 %v95, %v94
    %v106 = vpack.c.b16 %v97, %v96
    %v107 = vpack.c.b16 %v99, %v98
    %116 = vmatpush.bf16.msra.mxu0 %v107
    %117 = vmatpush.bf16.msra.mxu0 %v106
    %118 = vmatpush.bf16.msra.mxu0 %v105
    %119 = vmatpush.bf16.msra.mxu0 %v104
    %120 = vmatpush.bf16.msra.mxu0 %v103
    %121 = vmatpush.bf16.msra.mxu0 %v102
    %122 = vmatpush.bf16.msra.mxu0 %v101
    %123 = vmatpush.bf16.msra.mxu0 %v100
    %124 = vmatmul.bf16.gmra.mxu0 %v66
    %v125 = vpop.f32.mrf.mxu0
    %v126 = vadd.f32 0.0, %v125
    %v127 = vpop.f32.mrf.mxu0
    %v128 = vadd.f32 0.0, %v127
    %129 = vdwg.mxu0
    %130 = vst [vmem:[#allocation7] sm:$0xff] %v126
    %131 = vst [vmem:[#allocation7 + $0x8] sm:$0xff] %v128
    // Predicated region
    $region18: #{tpu_custom_call.1} parent=1 // pred_check
      _
    $region19: #{tpu_custom_call.1} parent=1 // pred_check_branch
      %133 = sbr.rel (0) target = $region21
    $region20: #{tpu_custom_call.1} parent=1 // pred_region
      %135 = vsyncadd [#allocation4], 0
      %s136 = sshll.u32 [#allocation7], 4
      %s137 = int_to_ptr.vmem [resolvable:$true] %s136
      %s138 = sshll.u32 %s2, 4
      %s139 = int_to_ptr.hbm [resolvable:$true] %s138
      %144 = dma.vmem_to_hbm [thread:$0]  %s137, 256, %s139, [#allocation4], 128, 128, 8
    $region21: #{tpu_custom_call.1} parent=1 // pred_fallthru
      _
    // Predicated region
    $region22: #{tpu_custom_call.1} parent=1 // pred_check
      _
    $region23: #{tpu_custom_call.1} parent=1 // pred_check_branch
      %146 = sbr.rel (0) target = $region25
    $region24: #{tpu_custom_call.1} parent=1 // pred_region
      %148 = dma.done [#allocation4], 256
    $region25: #{tpu_custom_call.1} parent=1 // pred_fallthru
      _
    %149 = vsyncpa [#allocation3], 1
    %150 = vsyncpa [#allocation6], 1
    %151 = vsyncpa [#allocation4], 1

</llo_original>
